<compile_context>
chip_gen: v5e
topology: v5e:2x2
jax: 0.10.0
libtpu: 0.0.40
codegen_flags: <defaults>
</compile_context>

<pallas_src>
import jax
import jax.numpy as jnp
from jax import lax
from jax.experimental import pallas as pl
from jax.experimental.pallas import tpu as pltpu


def _angleproto_kernel(w_ref, b_ref, pos_ref, anct_ref, loss_ref, corr_ref):
    f32 = jnp.float32
    eps_sq = f32(1e-16)                  # (1e-8)^2 cosine-similarity clamp

    tn = pos_ref.shape[0]                # positive rows handled by this grid step
    n_total = anct_ref.shape[1]          # N (columns of the similarity matrix)

    # Normalize the streamed positive rows in f32 (EUP rsqrt -> free slot).
    pos = pos_ref[...].astype(f32)                                     # (tn, D)
    sq = jnp.sum(pos * pos, axis=-1, keepdims=True)
    pos_n = pos * lax.rsqrt(jnp.maximum(sq, eps_sq))

    w = w_ref[0]
    b = b_ref[0]

    # Cosine-similarity logits on the MXU: (tn, D) x (D, N) with contraction
    # ((1,), (0,)) against the pre-transposed anchor -> no per-tile XLU transpose.
    cos = lax.dot_general(
        pos_n.astype(anct_ref.dtype), anct_ref[...],
        dimension_numbers=(((1,), (0,)), ((), ())),
        preferred_element_type=jnp.float32)                            # (tn, N)
    logits = cos * w + b

    # Diagonal (label == row index) logits extracted from the SAME tile so target
    # and non-target logits share identical matmul precision.
    row0 = pl.program_id(0) * tn
    col = lax.broadcasted_iota(jnp.int32, (tn, n_total), 1)
    row = lax.broadcasted_iota(jnp.int32, (tn, n_total), 0) + row0
    diag = jnp.sum(jnp.where(col == row, logits, f32(0.0)),
                   axis=-1, keepdims=True)                             # (tn, 1)

    # Cross entropy with label = arange(N), restricted to this row tile.
    rowmax = jnp.max(logits, axis=-1, keepdims=True)                   # (tn, 1)
    lse = rowmax + jnp.log(jnp.sum(jnp.exp(logits - rowmax),
                                   axis=-1, keepdims=True))
    tile_loss = jnp.sum(lse - diag)

    # Top-1 accuracy with first-maximal-index tie-breaking (== torch argmax).
    first_argmax = jnp.min(jnp.where(logits >= rowmax, col, n_total),
                           axis=-1, keepdims=True)                     # (tn, 1)
    row_idx = row0 + lax.broadcasted_iota(jnp.int32, (tn, 1), 0)
    tile_correct = jnp.sum((first_argmax == row_idx).astype(f32))

    # Per-tile partial results (tiny per-step VMEM blocks; wrapper reduces).
    loss_ref[...] = jnp.full(loss_ref.shape, tile_loss, f32)
    corr_ref[...] = jnp.full(corr_ref.shape, tile_correct, f32)


def angleproto_forward(x, w, b, *, row_tile=None, matmul_dtype=jnp.bfloat16):
    """AngleProto forward. x: (N, M, D) with M >= 2; w, b scalar parameters.

    Returns (nloss, prec1) like the PyTorch module."""
    N, M, D = x.shape
    if M < 2:
        raise ValueError("AngleProto requires x.shape[1] >= 2")
    w = jnp.asarray(w, jnp.float32).reshape((1,))
    b = jnp.asarray(b, jnp.float32).reshape((1,))

    # ---- Hoisted once-per-call precompute (fused in XLA; x read from HBM once).
    xf = x.astype(jnp.float32)
    pos = xf[:, 0, :]                                     # (N, D) out_positive
    anchor = jnp.mean(xf[:, 1:, :], axis=1)               # (N, D) out_anchor
    anc_norm = jnp.sqrt(jnp.maximum(
        jnp.sum(anchor * anchor, axis=-1, keepdims=True), jnp.float32(1e-16)))
    anc_t = jnp.transpose(anchor / anc_norm).astype(matmul_dtype)   # (D, N)
    pos_in = pos.astype(matmul_dtype)                     # streamed in matmul dtype

    # ---- Row tiling: grid >= 2 once N >= 256 (feeds the v7x second TensorCore),
    #      256-aligned tiles for the v6e/v7x MXU, 128 fallback for v5e.
    if row_tile is None:
        row_tile = N
        if N >= 256:
            for t in (1024, 768, 512, 256, 128):
                if t <= N // 2 and N % t == 0:
                    row_tile = t
                    break
    if N % row_tile != 0 or (row_tile != N and row_tile % 8 != 0):
        row_tile = N

    # ---- VMEM footprint: resident (D, N) anchor (constant index map -> fetched
    #      once; counted x2 for the default buffer pair), streamed (tn, D)
    #      positives (double-buffered) and the (tn, N) f32 logits temporaries.
    mm_bytes = jnp.dtype(matmul_dtype).itemsize

    def vmem_estimate(tn):
        anchor_bytes = 2 * D * N * mm_bytes                       # resident anchor^T
        pos_bytes = 2 * tn * D * mm_bytes                         # streamed positives
        temp_bytes = 4 * (3 * tn * D + 7 * tn * max(N, 128))      # f32 temporaries
        out_bytes = 2 * 2 * 8 * 128 * 4
        return anchor_bytes + pos_bytes + temp_bytes + out_bytes + (2 << 20)

    budget = 48 << 20        # leave headroom below v7x's 64 MiB physical VMEM
    while (vmem_estimate(row_tile) > budget and row_tile > 128
           and row_tile % 256 == 0 and N % (row_tile // 2) == 0):
        row_tile //= 2
    if vmem_estimate(row_tile) > budget:
        # TODO(synk): online-softmax column tiling over the anchor axis (second
        # grid dim with running max/sum accumulators, "arbitrary" semantics) to
        # bound VMEM independent of N for multi-thousand-speaker batches.
        raise NotImplementedError(
            "AngleProto Pallas kernel: anchor/logits footprint exceeds the "
            "single-pass VMEM budget; column-tiled online softmax not implemented")
    grid = N // row_tile
    vmem_limit = int(min(max(vmem_estimate(row_tile) + (8 << 20), 32 << 20), 56 << 20))

    out_shape = (jax.ShapeDtypeStruct((grid, 8, 128), jnp.float32),
                 jax.ShapeDtypeStruct((grid, 8, 128), jnp.float32))

    loss_parts, corr_parts = pl.pallas_call(
        _angleproto_kernel,
        out_shape=out_shape,
        grid=(grid,),
        in_specs=[
            pl.BlockSpec(memory_space=pltpu.MemorySpace.SMEM),         # w (scalar)
            pl.BlockSpec(memory_space=pltpu.MemorySpace.SMEM),         # b (scalar)
            pl.BlockSpec((row_tile, D), lambda i: (i, 0)),             # positives (streamed)
            pl.BlockSpec((D, N), lambda i: (0, 0)),                    # anchor^T (resident)
        ],
        out_specs=(
            pl.BlockSpec((1, 8, 128), lambda i: (i, 0, 0)),
            pl.BlockSpec((1, 8, 128), lambda i: (i, 0, 0)),
        ),
        compiler_params=pltpu.CompilerParams(
            dimension_semantics=("parallel",),                         # v7x megacore over row tiles
            vmem_limit_bytes=vmem_limit),
    )(w, b, pos_in, anc_t)

    nloss = jnp.sum(loss_parts[:, 0, 0]) / jnp.float32(N)
    prec1 = jnp.sum(corr_parts[:, 0, 0]) / jnp.float32(N) * jnp.float32(100.0)
    return nloss, prec1


def _angleproto_reference(x, w, b):
    """Pure-JAX reference mirroring the PyTorch forward."""
    x = x.astype(jnp.float32)
    n = x.shape[0]
    out_anchor = jnp.mean(x[:, 1:, :], axis=1)
    out_positive = x[:, 0, :]
    eps = 1e-8
    dots = out_positive @ out_anchor.T
    n1 = jnp.sum(out_positive ** 2, axis=-1, keepdims=True)
    n2 = jnp.sum(out_anchor ** 2, axis=-1, keepdims=True)
    cos = dots / jnp.sqrt(jnp.maximum(n1 * n2.T, eps * eps))
    logits = cos * jnp.float32(w) + jnp.float32(b)
    labels = jnp.arange(n)
    logp = jax.nn.log_softmax(logits, axis=-1)
    nloss = -jnp.mean(logp[labels, labels])
    prec1 = jnp.mean((jnp.argmax(logits, axis=-1) == labels).astype(jnp.float32)) * 100.0
    return nloss, prec1


if __name__ == "__main__":
    # Module __init__ defaults: w = 10.0, b = -5.0.
    w = jnp.float32(10.0)
    b = jnp.float32(-5.0)

    # Small example: 8 speakers, 3 utterances each, 128-dim embeddings.
    key = jax.random.PRNGKey(0)
    x = jax.random.normal(key, (8, 3, 128), dtype=jnp.float32)

    # Correctness check with f32 MXU operands against the pure-JAX reference.
    loss_f32, prec_f32 = angleproto_forward(x, w, b, matmul_dtype=jnp.float32)
    loss_ref, prec_ref = _angleproto_reference(x, w, b)
    jax.block_until_ready((loss_f32, prec_f32, loss_ref, prec_ref))
    assert abs(float(loss_f32) - float(loss_ref)) < 1e-3, (float(loss_f32), float(loss_ref))
    assert abs(float(prec_f32) - float(prec_ref)) < 1e-3, (float(prec_f32), float(prec_ref))

    # Multi-tile path (grid = 2): 16 speakers, explicit row_tile = 8.
    x2 = jax.random.normal(jax.random.PRNGKey(1), (16, 3, 128), dtype=jnp.float32)
    loss2, prec2 = angleproto_forward(x2, w, b, row_tile=8, matmul_dtype=jnp.float32)
    loss2_ref, prec2_ref = _angleproto_reference(x2, w, b)
    jax.block_until_ready((loss2, prec2, loss2_ref, prec2_ref))
    assert abs(float(loss2) - float(loss2_ref)) < 1e-3, (float(loss2), float(loss2_ref))
    assert abs(float(prec2) - float(prec2_ref)) < 1e-3, (float(prec2), float(prec2_ref))

    # Default (performance) configuration: bf16 MXU operands, f32 everything else.
    nloss, prec1 = angleproto_forward(x, w, b)
    jax.block_until_ready((nloss, prec1))
    assert bool(jnp.isfinite(nloss)) and bool(jnp.isfinite(prec1))
    assert abs(float(nloss) - float(loss_ref)) < 0.1, (float(nloss), float(loss_ref))
    print("KERNEL_OK")
</pallas_src>

<mosaic_0001>
module attributes {stable_mosaic.version = 11 : i64} {
  func.func @_angleproto_kernel(%arg0: i32, %arg1: memref<1xf32, #tpu.memory_space<smem>>, %arg2: memref<1xf32, #tpu.memory_space<smem>>, %arg3: memref<8x128xf32, #tpu.memory_space<vmem>>, %arg4: memref<128x8xf32, #tpu.memory_space<vmem>>, %arg5: memref<1x8x128xf32, #tpu.memory_space<vmem>>, %arg6: memref<1x8x128xf32, #tpu.memory_space<vmem>>) attributes {dimension_semantics = [#tpu.dimension_semantics<parallel>], iteration_bounds = array<i64: 1>, scalar_prefetch = 0 : i64, scratch_operands = 0 : i64, tpu.core_type = #tpu.core_type<tc>, window_params = [{transform_indices = @transform_0, window_bounds = array<i64: 1>}, {transform_indices = @transform_1, window_bounds = array<i64: 1>}, {transform_indices = @transform_2, window_bounds = array<i64: 8, 128>}, {pipeline_mode = #tpu.pipeline_mode<synchronous>, transform_indices = @transform_3, window_bounds = array<i64: 128, 8>}, {transform_indices = @transform_4, window_bounds = array<i64: 1, 8, 128>}, {transform_indices = @transform_5, window_bounds = array<i64: 1, 8, 128>}]} {
    %c0 = arith.constant 0 : index
    %c0_0 = arith.constant 0 : index
    %0 = vector.load %arg3[%c0, %c0_0] : memref<8x128xf32, #tpu.memory_space<vmem>>, vector<8x128xf32>
    %1 = arith.mulf %0, %0 : vector<8x128xf32>
    %cst = arith.constant dense<0.000000e+00> : vector<8xf32>
    %2 = vector.multi_reduction <add>, %1, %cst [1] : vector<8x128xf32> to vector<8xf32>
    %3 = vector.shape_cast %2 : vector<8xf32> to vector<8x1xf32>
    %cst_1 = arith.constant 1.000000e-16 : f32
    %4 = vector.broadcast %cst_1 : f32 to vector<8x1xf32>
    %5 = arith.maximumf %3, %4 : vector<8x1xf32>
    %6 = math.rsqrt %5 : vector<8x1xf32>
    %7 = vector.broadcast %6 : vector<8x1xf32> to vector<8x128xf32>
    %8 = arith.mulf %0, %7 : vector<8x128xf32>
    %c0_2 = arith.constant 0 : index
    %9 = memref.load %arg1[%c0_2] : memref<1xf32, #tpu.memory_space<smem>>
    %c0_3 = arith.constant 0 : index
    %10 = memref.load %arg2[%c0_3] : memref<1xf32, #tpu.memory_space<smem>>
    %c0_4 = arith.constant 0 : index
    %c0_5 = arith.constant 0 : index
    %11 = vector.load %arg4[%c0_4, %c0_5] : memref<128x8xf32, #tpu.memory_space<vmem>>, vector<128x8xf32>
    %cst_6 = arith.constant dense<0.000000e+00> : vector<8x8xf32>
    %12 = tpu.matmul %8, %11, %cst_6 {dimension_numbers = #tpu.dot_dimension_numbers<[1], [0], [0], [1], [0, 0, 1, 1], [], []>} : vector<8x128xf32>, vector<128x8xf32>, vector<8x8xf32> -> vector<8x8xf32>
    %13 = vector.broadcast %9 : f32 to vector<8x8xf32>
    %14 = arith.mulf %12, %13 : vector<8x8xf32>
    %15 = vector.broadcast %10 : f32 to vector<8x8xf32>
    %16 = arith.addf %14, %15 : vector<8x8xf32>
    %c8_i32 = arith.constant 8 : i32
    %17 = arith.muli %arg0, %c8_i32 : i32
    %18 = tpu.iota {dimensions = array<i32: 1>} : vector<8x8xi32>
    %19 = tpu.iota {dimensions = array<i32: 0>} : vector<8x8xi32>
    %20 = vector.broadcast %17 : i32 to vector<8x8xi32>
    %21 = arith.addi %19, %20 : vector<8x8xi32>
    %22 = arith.cmpi eq, %18, %21 : vector<8x8xi32>
    %cst_7 = arith.constant 0.000000e+00 : f32
    %23 = vector.broadcast %cst_7 : f32 to vector<8x8xf32>
    %24 = arith.select %22, %16, %23 : vector<8x8xi1>, vector<8x8xf32>
    %cst_8 = arith.constant dense<0.000000e+00> : vector<8xf32>
    %25 = vector.multi_reduction <add>, %24, %cst_8 [1] : vector<8x8xf32> to vector<8xf32>
    %26 = vector.shape_cast %25 : vector<8xf32> to vector<8x1xf32>
    %cst_9 = arith.constant dense<0xFF800000> : vector<8xf32>
    %27 = vector.multi_reduction <maximumf>, %16, %cst_9 [1] : vector<8x8xf32> to vector<8xf32>
    %28 = vector.shape_cast %27 : vector<8xf32> to vector<8x1xf32>
    %29 = vector.broadcast %28 : vector<8x1xf32> to vector<8x8xf32>
    %30 = arith.subf %16, %29 : vector<8x8xf32>
    %31 = math.exp %30 : vector<8x8xf32>
    %cst_10 = arith.constant dense<0.000000e+00> : vector<8xf32>
    %32 = vector.multi_reduction <add>, %31, %cst_10 [1] : vector<8x8xf32> to vector<8xf32>
    %33 = vector.shape_cast %32 : vector<8xf32> to vector<8x1xf32>
    %34 = math.log %33 : vector<8x1xf32>
    %35 = arith.addf %28, %34 : vector<8x1xf32>
    %36 = arith.subf %35, %26 : vector<8x1xf32>
    %37 = vector.shape_cast %36 : vector<8x1xf32> to vector<1x8x1xf32>
    %cst_11 = arith.constant dense<0.000000e+00> : vector<1xf32>
    %38 = vector.multi_reduction <add>, %37, %cst_11 [1, 2] : vector<1x8x1xf32> to vector<1xf32>
    %39 = vector.shape_cast %38 : vector<1xf32> to vector<1x1x1xf32>
    %40 = vector.extract %39[0, 0, 0] : f32 from vector<1x1x1xf32>
    %41 = vector.broadcast %28 : vector<8x1xf32> to vector<8x8xf32>
    %42 = arith.cmpf oge, %16, %41 : vector<8x8xf32>
    %c8_i32_12 = arith.constant 8 : i32
    %43 = vector.broadcast %c8_i32_12 : i32 to vector<8x8xi32>
    %44 = arith.select %42, %18, %43 : vector<8x8xi1>, vector<8x8xi32>
    %cst_13 = arith.constant dense<2147483647> : vector<8xi32>
    %45 = vector.multi_reduction <minsi>, %44, %cst_13 [1] : vector<8x8xi32> to vector<8xi32>
    %46 = vector.shape_cast %45 : vector<8xi32> to vector<8x1xi32>
    %47 = tpu.iota {dimensions = array<i32: 0>} : vector<8x1xi32>
    %48 = vector.broadcast %17 : i32 to vector<8x1xi32>
    %49 = arith.addi %48, %47 : vector<8x1xi32>
    %50 = arith.cmpi eq, %46, %49 : vector<8x1xi32>
    %51 = arith.extui %50 : vector<8x1xi1> to vector<8x1xi32>
    %52 = arith.sitofp %51 : vector<8x1xi32> to vector<8x1xf32>
    %53 = vector.shape_cast %52 : vector<8x1xf32> to vector<1x8x1xf32>
    %cst_14 = arith.constant dense<0.000000e+00> : vector<1xf32>
    %54 = vector.multi_reduction <add>, %53, %cst_14 [1, 2] : vector<1x8x1xf32> to vector<1xf32>
    %55 = vector.shape_cast %54 : vector<1xf32> to vector<1x1x1xf32>
    %56 = vector.extract %55[0, 0, 0] : f32 from vector<1x1x1xf32>
    %57 = vector.broadcast %40 : f32 to vector<1x8x128xf32>
    %c0_15 = arith.constant 0 : index
    %c0_16 = arith.constant 0 : index
    %c0_17 = arith.constant 0 : index
    %58 = vector.load %arg5[%c0_15, %c0_16, %c0_17] : memref<1x8x128xf32, #tpu.memory_space<vmem>>, vector<1x8x128xf32>
    tpu.vector_store %arg5[%c0_15, %c0_16, %c0_17], %57 {strides = array<i32>} : memref<1x8x128xf32, #tpu.memory_space<vmem>>, vector<1x8x128xf32>,
    %59 = vector.broadcast %56 : f32 to vector<1x8x128xf32>
    %c0_18 = arith.constant 0 : index
    %c0_19 = arith.constant 0 : index
    %c0_20 = arith.constant 0 : index
    %60 = vector.load %arg6[%c0_18, %c0_19, %c0_20] : memref<1x8x128xf32, #tpu.memory_space<vmem>>, vector<1x8x128xf32>
    tpu.vector_store %arg6[%c0_18, %c0_19, %c0_20], %59 {strides = array<i32>} : memref<1x8x128xf32, #tpu.memory_space<vmem>>, vector<1x8x128xf32>,
    return
  }
  func.func @transform_0(%arg0: i32) -> i32 {
    %c0_i32 = arith.constant 0 : i32
    %c0_i32_0 = arith.constant 0 : i32
    return %c0_i32 : i32
  }
  func.func @transform_1(%arg0: i32) -> i32 {
    %c0_i32 = arith.constant 0 : i32
    %c0_i32_0 = arith.constant 0 : i32
    return %c0_i32 : i32
  }
  func.func @transform_2(%arg0: i32) -> (i32, i32) {
    %c0_i32 = arith.constant 0 : i32
    %c0_i32_0 = arith.constant 0 : i32
    return %arg0, %c0_i32 : i32, i32
  }
  func.func @transform_3(%arg0: i32) -> (i32, i32) {
    %c0_i32 = arith.constant 0 : i32
    %c0_i32_0 = arith.constant 0 : i32
    %c0_i32_1 = arith.constant 0 : i32
    return %c0_i32, %c0_i32_0 : i32, i32
  }
  func.func @transform_4(%arg0: i32) -> (i32, i32, i32) {
    %c0_i32 = arith.constant 0 : i32
    %c0_i32_0 = arith.constant 0 : i32
    %c0_i32_1 = arith.constant 0 : i32
    return %arg0, %c0_i32, %c0_i32_0 : i32, i32, i32
  }
  func.func @transform_5(%arg0: i32) -> (i32, i32, i32) {
    %c0_i32 = arith.constant 0 : i32
    %c0_i32_0 = arith.constant 0 : i32
    %c0_i32_1 = arith.constant 0 : i32
    return %arg0, %c0_i32, %c0_i32_0 : i32, i32, i32
  }
}

</mosaic_0001>

<llo_original>
// kernel: tpu_custom_call.1
$region0: #{tpu_custom_call.1}
  #allocation0 [shape = 'u32[]', space=smem, size = 0x4, offset = 0x4, fixed_abs, tag = 'smem constant byte address 0x4 - core index']
  #allocation1 [shape = 'u32[72,128]{1,0:T(1,128)}', space=vmem, size = 0x9000, scoped, tag = 'internal scratch']
  #allocation2 [shape = 'f32[1]{0:T(128)S(6)}', space=smem, size = 0x200, scoped, tag = 'scoped memory for tpu_custom_call.1']
  #allocation3 [shape = 'f32[1]{0:T(128)S(6)}', space=smem, size = 0x200, scoped, tag = 'scoped memory for tpu_custom_call.1']
  %s0 = inlined_call_operand.<no memory space> [shape: f32[1], index: 0, kind: input, shape index: {}]
  %s1 = inlined_call_operand.<no memory space> [shape: f32[1], index: 1, kind: input, shape index: {}]
  %s2 = inlined_call_operand.vmem [shape: f32[8,128], index: 2, kind: input, shape index: {}]
  %s3 = inlined_call_operand.vmem [shape: f32[128,8], index: 3, kind: input, shape index: {}]
  %s4 = inlined_call_operand.hbm [shape: f32[1,8,128], index: 4, kind: output, shape index: {0}]
  %s5 = inlined_call_operand.hbm [shape: f32[1,8,128], index: 5, kind: output, shape index: {1}]
  %6 = xla_tuple %s4, %s5
  %s7 = sld [smem:[#allocation0]]
  $region34: #{tpu_custom_call.1} parent=0
    _
  %s9 = ssub.s32 1, %s7
  %s10 = scalar_select 0, %s9, %s7
  %11 = sst [smem:[#allocation2]] %s0
  %12 = sst [smem:[#allocation3]] %s1
  $region1: #{tpu_custom_call.1} parent=0
    #allocation4 [shape = 'u8[4096]{0}', space=vmem, size = 0x1000, scoped, tag = 'output window, operand 0, single buffered']
    #allocation5 [shape = 's32[1]{0}', space=sflag, size = 0x4, scoped, tag = 'scoped memory for tpu_custom_call.1']
    #allocation6 [shape = 'u8[4096]{0}', space=vmem, size = 0x1000, scoped, tag = 'output window, operand 1, single buffered']
    #allocation7 [shape = 's32[1]{0}', space=sflag, size = 0x4, scoped, tag = 'scoped memory for tpu_custom_call.1']
    %13 = vsyncpa [#allocation5], 0
    %14 = vsyncpa [#allocation7], 0
    // Predicated region
    $region2: #{tpu_custom_call.1} parent=1 // pred_check
      _
    $region3: #{tpu_custom_call.1} parent=1 // pred_check_branch
      %16 = sbr.rel (0) target = $region5
    $region4: #{tpu_custom_call.1} parent=1 // pred_region
      _
    $region5: #{tpu_custom_call.1} parent=1 // pred_fallthru
      _
    // Predicated region
    $region6: #{tpu_custom_call.1} parent=1 // pred_check
      _
    $region7: #{tpu_custom_call.1} parent=1 // pred_check_branch
      %18 = sbr.rel (0) target = $region9
    $region8: #{tpu_custom_call.1} parent=1 // pred_region
      _
    $region9: #{tpu_custom_call.1} parent=1 // pred_fallthru
      _
    // Predicated region
    $region10: #{tpu_custom_call.1} parent=1 // pred_check
      _
    $region11: #{tpu_custom_call.1} parent=1 // pred_check_branch
      %20 = sbr.rel (0) target = $region13
    $region12: #{tpu_custom_call.1} parent=1 // pred_region
      _
    $region13: #{tpu_custom_call.1} parent=1 // pred_fallthru
      _
    // Predicated region
    $region14: #{tpu_custom_call.1} parent=1 // pred_check
      _
    $region15: #{tpu_custom_call.1} parent=1 // pred_check_branch
      %22 = sbr.rel (0) target = $region17
    $region16: #{tpu_custom_call.1} parent=1 // pred_region
      _
    $region17: #{tpu_custom_call.1} parent=1 // pred_fallthru
      _
    %v23 = vld [vmem:[%s2] sm:$0xff]
    %v24 = vmul.f32 %v23, %v23
    %25 = vadd.xlane.f32.xlu0 %v24
    %v26 = vpop.xlane.xlu0 %25
    %v27 = vmax.f32 %v26, 1e-16
    %v28 = vrsqrt.pop %v27
    %v29 = vmul.f32 %v28, %v27
    %v30 = vmul.f32 %v29, %v28
    %v31 = vmul.f32 0.5, %v30
    %v32 = vsub.f32 1.5, %v31
    %v33 = vmul.f32 %v28, %v32
    %vm34 = vweird.f32 %v27
    %vm35 = vweird.f32 %v28
    %vm36 = vmor %vm34, %vm35
    %v37 = vsel %vm36, %v28, %v33
    %v38 = vmul.f32 %v23, %v37
    %s39 = sld [smem:[#allocation2]]
    %s40 = sld [smem:[#allocation3]]
    %v41 = vld [vmem:[%s3] sm:$0xff]
    %v42 = vld [vmem:[%s3 + $0x8] sm:$0xff]
    %v43 = vld [vmem:[%s3 + $0x10] sm:$0xff]
    %v44 = vld [vmem:[%s3 + $0x18] sm:$0xff]
    %v45 = vld [vmem:[%s3 + $0x20] sm:$0xff]
    %v46 = vld [vmem:[%s3 + $0x28] sm:$0xff]
    %v47 = vld [vmem:[%s3 + $0x30] sm:$0xff]
    %v48 = vld [vmem:[%s3 + $0x38] sm:$0xff]
    %v49 = vld [vmem:[%s3 + $0x40] sm:$0xff]
    %v50 = vld [vmem:[%s3 + $0x48] sm:$0xff]
    %v51 = vld [vmem:[%s3 + $0x50] sm:$0xff]
    %v52 = vld [vmem:[%s3 + $0x58] sm:$0xff]
    %v53 = vld [vmem:[%s3 + $0x60] sm:$0xff]
    %v54 = vld [vmem:[%s3 + $0x68] sm:$0xff]
    %v55 = vld [vmem:[%s3 + $0x70] sm:$0xff]
    %v56 = vld [vmem:[%s3 + $0x78] sm:$0xff]
    %57 = vmatpush.msra.mxu0 %v56
    %58 = vmatpush.msra.mxu0 %v55
    %59 = vmatpush.msra.mxu0 %v54
    %60 = vmatpush.msra.mxu0 %v53
    %61 = vmatpush.msra.mxu0 %v52
    %62 = vmatpush.msra.mxu0 %v51
    %63 = vmatpush.msra.mxu0 %v50
    %64 = vmatpush.msra.mxu0 %v49
    %65 = vmatpush.msra.mxu0 %v48
    %66 = vmatpush.msra.mxu0 %v47
    %67 = vmatpush.msra.mxu0 %v46
    %68 = vmatpush.msra.mxu0 %v45
    %69 = vmatpush.msra.mxu0 %v44
    %70 = vmatpush.msra.mxu0 %v43
    %71 = vmatpush.msra.mxu0 %v42
    %72 = vmatpush.msra.mxu0 %v41
    %73 = vmatmul.f32.gmra.mxu0 %v38
    %v74 = vpop.f32.mrf.mxu0
    %v75 = vadd.f32 0.0, %v74
    %76 = vdwg.mxu0
    %v77 = vstv %s39
    %v78 = vmul.f32 %v75, %v77
    %v79 = vstv %s40
    %v80 = vadd.f32 %v78, %v79
    %s81 = smul.u32 0, 8
    %v82 = vlaneseq
    %v83 = vand.u32 %v82, 127
    %v84 = vlaneseq
    %v85 = vshrl.u32 %v84, 7
    %v86 = vstv %s81
    %v87 = vadd.s32 %v85, %v86
    %vm88 = vcmp.eq.s32.totalorder %v83, %v87
    %v89 = vsel %vm88, %v80, 0.0
    %vm90 = vcmask 64512
    %v91 = vsel %vm90, %v89, 0.0
    %92 = vadd.xlane.f32.xlu0 %v91
    %v93 = vpop.xlane.xlu0 %92
    %v94 = vsel %vm90, %v80, -inf
    %95 = vmax.xlane.f32.xlu0 %v94
    %v96 = vpop.xlane.xlu0 %95
    %v97 = vsub.f32 %v80, %v96
    %v98 = vmul.f32 %v97, 1.442695
    %v99 = vpow.pop %v98
    %v100 = vsel %vm90, %v99, 0.0
    %101 = vadd.xlane.f32.xlu0 %v100
    %v102 = vpop.xlane.xlu0 %101
    %v103 = vlog2.pop %v102
    %v104 = vmul.f32 %v103, 0.6931472
    %v105 = vadd.f32 %v96, %v104
    %v106 = vsub.f32 %v105, %v93
    %vm107 = vcmask 7168
    %v108 = vsel %vm107, %v106, 0.0
    %109 = vadd.xlane.f32.xlu0 %v108
    %v110 = vpop.xlane.xlu0 %109
    %v111 = vrot.slane %v110, 4
    %v112 = vadd.f32 %v110, %v111
    %v113 = vrot.slane %v112, 2
    %v114 = vadd.f32 %v112, %v113
    %v115 = vrot.slane %v114, 1
    %v116 = vadd.f32 %v114, %v115
    %s117 = vtos %v116
    %vm118 = vcmp.ge.f32.partialorder %v80, %v96
    %v119 = vsel %vm118, %v83, 8
    %v120 = vsel %vm90, %v119, 2147483647
    %v121 = vand.u32 %v120, 65535
    %v122 = vshra.s32 %v120, 16
    %v123 = vcvt.s32.f32 %v121
    %v124 = vcvt.s32.f32 %v122
    %125 = vmin.xlane.f32.xlu0 %v124
    %v126 = vpop.xlane.xlu0 %125
    %vm127 = vcmp.eq.f32.partialorder %v124, %v126
    %v128 = vsel %vm127, %v123, inf
    %129 = vmin.xlane.f32.xlu0 %v128
    %v130 = vpop.xlane.xlu0 %129
    %v131 = vcvt.f32.s32 %v130
    %v132 = vcvt.f32.s32 %v126
    %v133 = vshll.u32 %v132, 16
    %v134 = vadd.s32 %v133, %v131
    %vm135 = vcmp.eq.s32.totalorder %v134, %v87
    %v136 = vsel %vm135, 1, 0
    %v137 = vcvt.s32.f32 %v136
    %v138 = vsel %vm107, %v137, 0.0
    %139 = vadd.xlane.f32.xlu0 %v138
    %v140 = vpop.xlane.xlu0 %139
    %v141 = vrot.slane %v140, 4
    %v142 = vadd.f32 %v140, %v141
    %v143 = vrot.slane %v142, 2
    %v144 = vadd.f32 %v142, %v143
    %v145 = vrot.slane %v144, 1
    %v146 = vadd.f32 %v144, %v145
    %s147 = vtos %v146
    %v148 = vstv %s117
    %149 = vst [vmem:[#allocation4] sm:$0xff] %v148
    %v150 = vstv %s147
    %151 = vst [vmem:[#allocation6] sm:$0xff] %v150
    // Predicated region
    $region18: #{tpu_custom_call.1} parent=1 // pred_check
      _
    $region19: #{tpu_custom_call.1} parent=1 // pred_check_branch
      %153 = sbr.rel (0) target = $region21
    $region20: #{tpu_custom_call.1} parent=1 // pred_region
      %155 = vsyncadd [#allocation5], 0
      %s157 = sshll.u32 [#allocation4], 4
      %s158 = int_to_ptr.vmem [resolvable:$true] %s157
      %s159 = sshll.u32 %s4, 4
      %s160 = int_to_ptr.hbm [resolvable:$true] %s159
      %162 = dma.vmem_to_hbm [thread:$0]  %s158, 128, %s160, [#allocation5]
    $region21: #{tpu_custom_call.1} parent=1 // pred_fallthru
      _
    // Predicated region
    $region22: #{tpu_custom_call.1} parent=1 // pred_check
      _
    $region23: #{tpu_custom_call.1} parent=1 // pred_check_branch
      %164 = sbr.rel (0) target = $region25
    $region24: #{tpu_custom_call.1} parent=1 // pred_region
      %166 = vsyncadd [#allocation7], 0
      %s168 = sshll.u32 [#allocation6], 4
      %s169 = int_to_ptr.vmem [resolvable:$true] %s168
      %s170 = sshll.u32 %s5, 4
      %s171 = int_to_ptr.hbm [resolvable:$true] %s170
      %173 = dma.vmem_to_hbm [thread:$0]  %s169, 128, %s171, [#allocation7]
    $region25: #{tpu_custom_call.1} parent=1 // pred_fallthru
      _
    // Predicated region
    $region26: #{tpu_custom_call.1} parent=1 // pred_check
      _
    $region27: #{tpu_custom_call.1} parent=1 // pred_check_branch
      %175 = sbr.rel (0) target = $region29
    $region28: #{tpu_custom_call.1} parent=1 // pred_region
      %177 = dma.done [#allocation5], 128
    $region29: #{tpu_custom_call.1} parent=1 // pred_fallthru
      _
    // Predicated region
    $region30: #{tpu_custom_call.1} parent=1 // pred_check
      _
    $region31: #{tpu_custom_call.1} parent=1 // pred_check_branch
      %179 = sbr.rel (0) target = $region33
    $region32: #{tpu_custom_call.1} parent=1 // pred_region
      %181 = dma.done [#allocation7], 128
    $region33: #{tpu_custom_call.1} parent=1 // pred_fallthru
      _
    %182 = vsyncpa [#allocation5], 1
    %183 = vsyncpa [#allocation7], 1

</llo_original>
